<compile_context>
chip_gen: v7x
topology: tpu7x:2x2x1
jax: 0.10.0
libtpu: 0.0.40
codegen_flags: <defaults>
</compile_context>

<pallas_src>
import math

import jax
import jax.numpy as jnp
from jax.experimental import pallas as pl
from jax.experimental.pallas import tpu as pltpu

_LANES = 128
_CLAMP_MAX = 1.0 - 0.0001
_SUBLANE = 16  # row-block multiple that satisfies both f32 (8,128) and bf16 (16,128) tiling


def _make_aselr_kernel(with_logging: bool, assume_binary_labels: bool,
                       rows: int, bn: int):
    lam = 3.0

    def kernel(x_ref, y_ref, t_ref, tn_ref, bce_ref, reg_ref, *log_refs):
        # Upcast to f32 for compute (HBM I/O may be bf16; v5e VPU has no bf16).
        x = x_ref[...].astype(jnp.float32)
        y = y_ref[...].astype(jnp.float32)
        t = t_ref[...].astype(jnp.float32)
        t_neg = tn_ref[...].astype(jnp.float32)

        # One shared exp for both the sigmoid and the BCE softplus (EUP dedup).
        e = jnp.exp(-jnp.abs(x))                 # exp(-|x|)
        softplus = jnp.log1p(e)                  # log(1 + exp(-|x|))
        inv = 1.0 / (1.0 + e)                    # exact: kernel is HBM-bound, approx rcp buys nothing
        sigmoid = jnp.where(x >= 0, inv, e * inv)

        y_pred = jnp.minimum(sigmoid, _CLAMP_MAX)
        y_pred_neg = 1.0 - y_pred

        pos_term = t * y_pred                    # targets * y_pred
        neg_term = lam * t_neg * y_pred_neg      # lam * targets_neg * (1 - y_pred)

        # reg = log(1 - (1*t*y_pred*(1-y) + lam*t_neg*(1-y_pred)*y))
        if assume_binary_labels:
            # y in {0,1}: one log per element instead of the blended form.
            reg = jnp.where(y >= 0.5,
                            jnp.log(1.0 - neg_term),
                            jnp.log(1.0 - pos_term))
        else:
            reg = jnp.log(1.0 - (pos_term * (1.0 - y) + neg_term * y))
        reg_ref[...] = reg.astype(reg_ref.dtype)

        # Numerically stable BCEWithLogits, reduction='none'.
        bce_ref[...] = (jnp.maximum(x, 0.0) - x * y + softplus).astype(bce_ref.dtype)

        if with_logging:
            pos_ref, neg_ref = log_refs
            # Mask rows of a ragged last block (their VMEM content is undefined);
            # explicitly zero-padded lane elements already contribute log(1-0)=0.
            i = pl.program_id(0)
            valid_rows = jnp.minimum(rows - i * bn, bn)
            row_ids = jax.lax.broadcasted_iota(jnp.int32, x.shape, 0)
            keep = row_ids < valid_rows
            # Per-tile, per-lane partial sums (sublane reduce only — XLU); the
            # means are finished in the wrapper with the unpadded element count.
            pos_ref[...] = jnp.sum(jnp.where(keep, jnp.log(1.0 - t * y_pred), 0.0),
                                   axis=0, keepdims=True)
            neg_ref[...] = jnp.sum(jnp.where(keep, jnp.log(1.0 - t_neg * y_pred_neg), 0.0),
                                   axis=0, keepdims=True)

    return kernel


def _choose_block_rows(rows: int, block_rows: int) -> int:
    """Pick the per-step row-block size.

    Big blocks amortize the ~0.35 us/step pipeline overhead; for mid-size
    problems we still keep >=4 grid steps so the DMA in/out pipeline actually
    overlaps with compute and the grid can split across both TCs on v7x.
    """
    if rows <= block_rows:
        return rows                       # single full-array block
    bn = block_rows
    if rows < 4 * block_rows:
        bn = max(min(block_rows, 512), -(-rows // 4))
    bn = ((bn + _SUBLANE - 1) // _SUBLANE) * _SUBLANE
    return rows if bn >= rows else bn


def aselr_forward(output, y_labeled, targets, targets_neg, *,
                  with_logging: bool = True, block_rows: int = 2048,
                  out_dtype=jnp.float32, assume_binary_labels: bool = False):
    """ASELR forward. Returns (bce_loss, reg[, reg_pos_mean, reg_neg_mean])."""
    shape = output.shape
    total = math.prod(shape)
    rows = -(-total // _LANES)            # ceil(total / 128)
    pad = rows * _LANES - total           # < 128 elements

    def _prep(a):
        flat = jnp.reshape(a, (-1,))      # free for contiguous row-major arrays
        if pad:
            # Pad only to the next 128-lane boundary; zero targets contribute
            # log(1-0)=0 to the logging sums, padded bce/reg are cropped below.
            # TODO(synk): even this small pad makes XLA rewrite the whole array
            # in HBM; a manual-DMA tail path would make the no-copy path universal.
            flat = jnp.pad(flat, (0, pad))
        return flat.reshape(rows, _LANES)

    xs = [_prep(a) for a in (output, y_labeled, targets, targets_neg)]

    bn = _choose_block_rows(rows, block_rows)
    num_tiles = -(-rows // bn)            # ragged last block is handled by Pallas

    blk = pl.BlockSpec((bn, _LANES), lambda i: (i, 0))
    sum_blk = pl.BlockSpec((1, _LANES), lambda i: (i, 0))

    out_shape = [jax.ShapeDtypeStruct((rows, _LANES), out_dtype),     # bce
                 jax.ShapeDtypeStruct((rows, _LANES), out_dtype)]     # reg
    out_specs = [blk, blk]
    if with_logging:
        out_shape += [jax.ShapeDtypeStruct((num_tiles, _LANES), jnp.float32)] * 2
        out_specs += [sum_blk, sum_blk]

    in_bytes = sum(jnp.dtype(a.dtype).itemsize for a in xs)
    out_bytes = 2 * jnp.dtype(out_dtype).itemsize
    cost = pl.CostEstimate(
        flops=20 * total,
        transcendentals=(6 if with_logging else 4) * total,
        bytes_accessed=total * (in_bytes + out_bytes),
    )

    results = pl.pallas_call(
        _make_aselr_kernel(with_logging, assume_binary_labels, rows, bn),
        grid=(num_tiles,),
        in_specs=[blk] * 4,
        out_specs=tuple(out_specs),
        out_shape=tuple(out_shape),
        compiler_params=pltpu.CompilerParams(
            dimension_semantics=("parallel",)),
        cost_estimate=cost,
    )(*xs)

    def _unflatten(a):
        flat = a.reshape(-1)
        if pad:
            flat = flat[:total]
        return flat.reshape(shape)

    bce_loss = _unflatten(results[0])
    reg = _unflatten(results[1])
    if with_logging:
        # TODO(synk): wandb.log has no Pallas equivalent; the two means are returned.
        inv_total = 1.0 / float(total)
        reg_pos_mean = jnp.sum(results[2]) * inv_total
        reg_neg_mean = jnp.sum(results[3]) * inv_total
        return bce_loss, reg, reg_pos_mean, reg_neg_mean
    return bce_loss, reg


def _reference(output, y, t, t_neg):
    y_pred = jnp.minimum(jax.nn.sigmoid(output), 1.0 - 0.0001)
    y_pred_neg = 1.0 - y_pred
    reg = jnp.log(1.0 - (t * y_pred * (1.0 - y) + 3.0 * t_neg * y_pred_neg * y))
    reg_pos = jnp.log(1.0 - t * y_pred)
    reg_neg = jnp.log(1.0 - t_neg * y_pred_neg)
    bce = (jnp.maximum(output, 0.0) - output * y
           + jnp.log1p(jnp.exp(-jnp.abs(output))))
    return bce, reg, jnp.mean(reg_pos), jnp.mean(reg_neg)


def _make_inputs(key, num_samples, num_classes, beta=0.9):
    k0, k1, k2 = jax.random.split(key, 3)
    output = jax.random.normal(k0, (num_samples, num_classes), jnp.float32)
    y_labeled = (jax.random.uniform(k1, (num_samples, num_classes)) > 0.5
                 ).astype(jnp.float32)
    # Deterministically synthesize the EMA prediction history that __init__ /
    # update_hist would have produced (pred_hist starts at zeros; one EMA step
    # against sigmoid of earlier logits; mixup_l = 1 so q == pred_hist).
    prev_logits = jax.random.normal(k2, (num_samples, num_classes), jnp.float32)
    prev_pred = jax.nn.sigmoid(prev_logits)
    targets = beta * 0.0 + (1.0 - beta) * prev_pred              # self.q
    targets_neg = beta * 0.0 + (1.0 - beta) * (1.0 - prev_pred)  # self.q_neg
    return output, y_labeled, targets, targets_neg


if __name__ == "__main__":
    key = jax.random.PRNGKey(0)

    # --- Case 1: module-default small shape (8 samples, 15 classes), f32. ---
    out, y_lab, tgt, tgt_neg = _make_inputs(key, 8, 15)
    bce, reg, rp, rn = jax.block_until_ready(
        aselr_forward(out, y_lab, tgt, tgt_neg))
    bce_r, reg_r, rp_r, rn_r = _reference(out, y_lab, tgt, tgt_neg)
    assert bce.shape == (8, 15) and reg.shape == (8, 15)
    assert jnp.allclose(bce, bce_r, atol=1e-5, rtol=1e-5)
    assert jnp.allclose(reg, reg_r, atol=1e-5, rtol=1e-5)      # exact sigmoid now
    assert jnp.allclose(rp, rp_r, atol=1e-4)
    assert jnp.allclose(rn, rn_r, atol=1e-4)

    # --- Case 2: zero-copy path (total % 128 == 0), multi-tile grid with a ---
    # --- ragged last block + masked logging sums; binary-label fast path.  ---
    key2 = jax.random.PRNGKey(1)
    out2, y2, t2, tn2 = _make_inputs(key2, 64, 34)          # 2176 elems = 17 rows
    bce2, reg2, rp2, rn2 = jax.block_until_ready(
        aselr_forward(out2, y2, t2, tn2, block_rows=8))      # -> 2 tiles, ragged tail
    bce2_r, reg2_r, rp2_r, rn2_r = _reference(out2, y2, t2, tn2)
    assert jnp.allclose(bce2, bce2_r, atol=1e-5, rtol=1e-5)
    assert jnp.allclose(reg2, reg2_r, atol=1e-5, rtol=1e-5)
    assert jnp.allclose(rp2, rp2_r, atol=1e-4)
    assert jnp.allclose(rn2, rn2_r, atol=1e-4)

    reg2b = jax.block_until_ready(
        aselr_forward(out2, y2, t2, tn2, block_rows=8,
                      assume_binary_labels=True))[1]
    assert jnp.allclose(reg2b, reg2_r, atol=1e-5, rtol=1e-5)

    # --- Case 3: bf16 HBM I/O, logging off (hot training path). ---
    key3 = jax.random.PRNGKey(2)
    out3, y3, t3, tn3 = _make_inputs(key3, 16, 24)           # 384 elems = 3 rows
    out3b, y3b, t3b, tn3b = (a.astype(jnp.bfloat16) for a in (out3, y3, t3, tn3))
    bce3, reg3 = jax.block_until_ready(
        aselr_forward(out3b, y3b, t3b, tn3b, with_logging=False,
                      out_dtype=jnp.bfloat16))
    bce3_r, reg3_r, _, _ = _reference(*(a.astype(jnp.float32)
                                        for a in (out3b, y3b, t3b, tn3b)))
    assert bce3.dtype == jnp.bfloat16 and reg3.dtype == jnp.bfloat16
    assert jnp.allclose(bce3.astype(jnp.float32), bce3_r, atol=2e-2, rtol=2e-2)
    assert jnp.allclose(reg3.astype(jnp.float32), reg3_r, atol=2e-2, rtol=2e-2)

    print("KERNEL_OK")
</pallas_src>

<mosaic_0001>
module attributes {stable_mosaic.version = 11 : i64} {
  func.func @kernel(%arg0: i32, %arg1: memref<1x128xf32, #tpu.memory_space<vmem>>, %arg2: memref<1x128xf32, #tpu.memory_space<vmem>>, %arg3: memref<1x128xf32, #tpu.memory_space<vmem>>, %arg4: memref<1x128xf32, #tpu.memory_space<vmem>>, %arg5: memref<1x128xf32, #tpu.memory_space<vmem>>, %arg6: memref<1x128xf32, #tpu.memory_space<vmem>>, %arg7: memref<1x128xf32, #tpu.memory_space<vmem>>, %arg8: memref<1x128xf32, #tpu.memory_space<vmem>>) attributes {dimension_semantics = [#tpu.dimension_semantics<parallel>], iteration_bounds = array<i64: 1>, scalar_prefetch = 0 : i64, scratch_operands = 0 : i64, tpu.core_type = #tpu.core_type<tc>, window_params = [{transform_indices = @transform_0, window_bounds = array<i64: 1, 128>}, {transform_indices = @transform_1, window_bounds = array<i64: 1, 128>}, {transform_indices = @transform_2, window_bounds = array<i64: 1, 128>}, {transform_indices = @transform_3, window_bounds = array<i64: 1, 128>}, {transform_indices = @transform_4, window_bounds = array<i64: 1, 128>}, {transform_indices = @transform_5, window_bounds = array<i64: 1, 128>}, {transform_indices = @transform_6, window_bounds = array<i64: 1, 128>}, {transform_indices = @transform_7, window_bounds = array<i64: 1, 128>}]} {
    %c0 = arith.constant 0 : index
    %c0_0 = arith.constant 0 : index
    %0 = vector.load %arg1[%c0, %c0_0] : memref<1x128xf32, #tpu.memory_space<vmem>>, vector<1x128xf32>
    %c0_1 = arith.constant 0 : index
    %c0_2 = arith.constant 0 : index
    %1 = vector.load %arg2[%c0_1, %c0_2] : memref<1x128xf32, #tpu.memory_space<vmem>>, vector<1x128xf32>
    %c0_3 = arith.constant 0 : index
    %c0_4 = arith.constant 0 : index
    %2 = vector.load %arg3[%c0_3, %c0_4] : memref<1x128xf32, #tpu.memory_space<vmem>>, vector<1x128xf32>
    %c0_5 = arith.constant 0 : index
    %c0_6 = arith.constant 0 : index
    %3 = vector.load %arg4[%c0_5, %c0_6] : memref<1x128xf32, #tpu.memory_space<vmem>>, vector<1x128xf32>
    %4 = math.absf %0 : vector<1x128xf32>
    %cst = arith.constant 0.000000e+00 : f32
    %5 = vector.broadcast %cst : f32 to vector<1x128xf32>
    %6 = arith.subf %5, %4 : vector<1x128xf32>
    %7 = math.exp %6 : vector<1x128xf32>
    %8 = math.log1p %7 : vector<1x128xf32>
    %cst_7 = arith.constant 1.000000e+00 : f32
    %9 = vector.broadcast %cst_7 : f32 to vector<1x128xf32>
    %10 = arith.addf %9, %7 : vector<1x128xf32>
    %cst_8 = arith.constant 1.000000e+00 : f32
    %11 = vector.broadcast %cst_8 : f32 to vector<1x128xf32>
    %12 = arith.divf %11, %10 : vector<1x128xf32>
    %cst_9 = arith.constant 0.000000e+00 : f32
    %13 = vector.broadcast %cst_9 : f32 to vector<1x128xf32>
    %14 = arith.cmpf oge, %0, %13 : vector<1x128xf32>
    %15 = arith.mulf %7, %12 : vector<1x128xf32>
    %16 = arith.select %14, %12, %15 : vector<1x128xi1>, vector<1x128xf32>
    %cst_10 = arith.constant 0.999899983 : f32
    %17 = vector.broadcast %cst_10 : f32 to vector<1x128xf32>
    %18 = arith.minimumf %16, %17 : vector<1x128xf32>
    %cst_11 = arith.constant 1.000000e+00 : f32
    %19 = vector.broadcast %cst_11 : f32 to vector<1x128xf32>
    %20 = arith.subf %19, %18 : vector<1x128xf32>
    %21 = arith.mulf %2, %18 : vector<1x128xf32>
    %cst_12 = arith.constant 3.000000e+00 : f32
    %22 = vector.broadcast %cst_12 : f32 to vector<1x128xf32>
    %23 = arith.mulf %22, %3 : vector<1x128xf32>
    %24 = arith.mulf %23, %20 : vector<1x128xf32>
    %cst_13 = arith.constant 1.000000e+00 : f32
    %25 = vector.broadcast %cst_13 : f32 to vector<1x128xf32>
    %26 = arith.subf %25, %1 : vector<1x128xf32>
    %27 = arith.mulf %21, %26 : vector<1x128xf32>
    %28 = arith.mulf %24, %1 : vector<1x128xf32>
    %29 = arith.addf %27, %28 : vector<1x128xf32>
    %cst_14 = arith.constant 1.000000e+00 : f32
    %30 = vector.broadcast %cst_14 : f32 to vector<1x128xf32>
    %31 = arith.subf %30, %29 : vector<1x128xf32>
    %32 = math.log %31 : vector<1x128xf32>
    %c0_15 = arith.constant 0 : index
    %c0_16 = arith.constant 0 : index
    %33 = vector.load %arg6[%c0_15, %c0_16] : memref<1x128xf32, #tpu.memory_space<vmem>>, vector<1x128xf32>
    tpu.vector_store %arg6[%c0_15, %c0_16], %32 {strides = array<i32>} : memref<1x128xf32, #tpu.memory_space<vmem>>, vector<1x128xf32>,
    %cst_17 = arith.constant 0.000000e+00 : f32
    %34 = vector.broadcast %cst_17 : f32 to vector<1x128xf32>
    %35 = arith.maximumf %0, %34 : vector<1x128xf32>
    %36 = arith.mulf %0, %1 : vector<1x128xf32>
    %37 = arith.subf %35, %36 : vector<1x128xf32>
    %38 = arith.addf %37, %8 : vector<1x128xf32>
    %c0_18 = arith.constant 0 : index
    %c0_19 = arith.constant 0 : index
    %39 = vector.load %arg5[%c0_18, %c0_19] : memref<1x128xf32, #tpu.memory_space<vmem>>, vector<1x128xf32>
    tpu.vector_store %arg5[%c0_18, %c0_19], %38 {strides = array<i32>} : memref<1x128xf32, #tpu.memory_space<vmem>>, vector<1x128xf32>,
    %c1_i32 = arith.constant 1 : i32
    %40 = arith.muli %arg0, %c1_i32 : i32
    %c1_i32_20 = arith.constant 1 : i32
    %41 = arith.subi %c1_i32_20, %40 : i32
    %c1_i32_21 = arith.constant 1 : i32
    %42 = arith.minsi %41, %c1_i32_21 : i32
    %43 = tpu.iota {dimensions = array<i32: 0>} : vector<1x128xi32>
    %44 = vector.broadcast %42 : i32 to vector<1x128xi32>
    %45 = arith.cmpi slt, %43, %44 : vector<1x128xi32>
    %46 = arith.mulf %2, %18 : vector<1x128xf32>
    %cst_22 = arith.constant 1.000000e+00 : f32
    %47 = vector.broadcast %cst_22 : f32 to vector<1x128xf32>
    %48 = arith.subf %47, %46 : vector<1x128xf32>
    %49 = math.log %48 : vector<1x128xf32>
    %cst_23 = arith.constant 0.000000e+00 : f32
    %50 = vector.broadcast %cst_23 : f32 to vector<1x128xf32>
    %51 = arith.select %45, %49, %50 : vector<1x128xi1>, vector<1x128xf32>
    %cst_24 = arith.constant dense<0.000000e+00> : vector<128xf32>
    %52 = vector.multi_reduction <add>, %51, %cst_24 [0] : vector<1x128xf32> to vector<128xf32>
    %53 = vector.shape_cast %52 : vector<128xf32> to vector<1x128xf32>
    %c0_25 = arith.constant 0 : index
    %c0_26 = arith.constant 0 : index
    %54 = vector.load %arg7[%c0_25, %c0_26] : memref<1x128xf32, #tpu.memory_space<vmem>>, vector<1x128xf32>
    tpu.vector_store %arg7[%c0_25, %c0_26], %53 {strides = array<i32>} : memref<1x128xf32, #tpu.memory_space<vmem>>, vector<1x128xf32>,
    %55 = arith.mulf %3, %20 : vector<1x128xf32>
    %cst_27 = arith.constant 1.000000e+00 : f32
    %56 = vector.broadcast %cst_27 : f32 to vector<1x128xf32>
    %57 = arith.subf %56, %55 : vector<1x128xf32>
    %58 = math.log %57 : vector<1x128xf32>
    %cst_28 = arith.constant 0.000000e+00 : f32
    %59 = vector.broadcast %cst_28 : f32 to vector<1x128xf32>
    %60 = arith.select %45, %58, %59 : vector<1x128xi1>, vector<1x128xf32>
    %cst_29 = arith.constant dense<0.000000e+00> : vector<128xf32>
    %61 = vector.multi_reduction <add>, %60, %cst_29 [0] : vector<1x128xf32> to vector<128xf32>
    %62 = vector.shape_cast %61 : vector<128xf32> to vector<1x128xf32>
    %c0_30 = arith.constant 0 : index
    %c0_31 = arith.constant 0 : index
    %63 = vector.load %arg8[%c0_30, %c0_31] : memref<1x128xf32, #tpu.memory_space<vmem>>, vector<1x128xf32>
    tpu.vector_store %arg8[%c0_30, %c0_31], %62 {strides = array<i32>} : memref<1x128xf32, #tpu.memory_space<vmem>>, vector<1x128xf32>,
    return
  }
  func.func @transform_0(%arg0: i32) -> (i32, i32) {
    %c0_i32 = arith.constant 0 : i32
    %c0_i32_0 = arith.constant 0 : i32
    return %arg0, %c0_i32 : i32, i32
  }
  func.func @transform_1(%arg0: i32) -> (i32, i32) {
    %c0_i32 = arith.constant 0 : i32
    %c0_i32_0 = arith.constant 0 : i32
    return %arg0, %c0_i32 : i32, i32
  }
  func.func @transform_2(%arg0: i32) -> (i32, i32) {
    %c0_i32 = arith.constant 0 : i32
    %c0_i32_0 = arith.constant 0 : i32
    return %arg0, %c0_i32 : i32, i32
  }
  func.func @transform_3(%arg0: i32) -> (i32, i32) {
    %c0_i32 = arith.constant 0 : i32
    %c0_i32_0 = arith.constant 0 : i32
    return %arg0, %c0_i32 : i32, i32
  }
  func.func @transform_4(%arg0: i32) -> (i32, i32) {
    %c0_i32 = arith.constant 0 : i32
    %c0_i32_0 = arith.constant 0 : i32
    return %arg0, %c0_i32 : i32, i32
  }
  func.func @transform_5(%arg0: i32) -> (i32, i32) {
    %c0_i32 = arith.constant 0 : i32
    %c0_i32_0 = arith.constant 0 : i32
    return %arg0, %c0_i32 : i32, i32
  }
  func.func @transform_6(%arg0: i32) -> (i32, i32) {
    %c0_i32 = arith.constant 0 : i32
    %c0_i32_0 = arith.constant 0 : i32
    return %arg0, %c0_i32 : i32, i32
  }
  func.func @transform_7(%arg0: i32) -> (i32, i32) {
    %c0_i32 = arith.constant 0 : i32
    %c0_i32_0 = arith.constant 0 : i32
    return %arg0, %c0_i32 : i32, i32
  }
}

</mosaic_0001>

<llo_original>
// kernel: tpu_custom_call.1
$region0: #{tpu_custom_call.1}
  #allocation0 [shape = 'u32[]', space=smem, size = 0x4, offset = 0x4, fixed_abs, tag = 'smem constant byte address 0x4 - core index']
  #allocation1 [shape = 'u32[144,128]{1,0:T(1,128)}', space=vmem, size = 0x12000, scoped, tag = 'internal scratch']
  %s0 = inlined_call_operand.hbm [shape: f32[1,128], index: 0, kind: input, shape index: {}]
  %s1 = inlined_call_operand.vmem [shape: f32[1,128], index: 1, kind: input, shape index: {}]
  %s2 = inlined_call_operand.vmem [shape: f32[1,128], index: 2, kind: input, shape index: {}]
  %s3 = inlined_call_operand.vmem [shape: f32[1,128], index: 3, kind: input, shape index: {}]
  %s4 = inlined_call_operand.hbm [shape: f32[1,128], index: 4, kind: output, shape index: {0}]
  %s5 = inlined_call_operand.hbm [shape: f32[1,128], index: 5, kind: output, shape index: {1}]
  %s6 = inlined_call_operand.hbm [shape: f32[1,128], index: 6, kind: output, shape index: {2}]
  %s7 = inlined_call_operand.hbm [shape: f32[1,128], index: 7, kind: output, shape index: {3}]
  %8 = xla_tuple %s4, %s5, %s6, %s7
  %s9 = sld [smem:[#allocation0]]
  $region54: #{tpu_custom_call.1} parent=0
    _
  %s11 = ssub.s32 1, %s9
  %s12 = scalar_select 0, %s11, %s9
  $region1: #{tpu_custom_call.1} parent=0
    #allocation2 [shape = 'u8[512]{0}', space=vmem, size = 0x400, scoped, tag = 'input window, operand 0, single buffered']
    #allocation3 [shape = 's32[1]{0}', space=sflag, size = 0x4, scoped, tag = 'scoped memory for tpu_custom_call.1']
    #allocation4 [shape = 's32[1]{0}', space=sflag, size = 0x4, scoped, tag = 'scoped memory for tpu_custom_call.1']
    #allocation5 [shape = 'u8[512]{0}', space=vmem, size = 0x400, scoped, tag = 'output window, operand 0, single buffered']
    #allocation6 [shape = 'u8[512]{0}', space=vmem, size = 0x400, scoped, tag = 'output window, operand 1, single buffered']
    #allocation7 [shape = 's32[1]{0}', space=sflag, size = 0x4, scoped, tag = 'scoped memory for tpu_custom_call.1']
    #allocation8 [shape = 'u8[512]{0}', space=vmem, size = 0x400, scoped, tag = 'output window, operand 2, single buffered']
    #allocation9 [shape = 'u8[512]{0}', space=vmem, size = 0x400, scoped, tag = 'output window, operand 3, single buffered']
    #allocation10 [shape = 's32[1]{0}', space=sflag, size = 0x4, scoped, tag = 'scoped memory for tpu_custom_call.1']
    %13 = vsyncpa [#allocation3], 0
    %14 = vsyncpa [#allocation4], 0
    %15 = vsyncpa [#allocation7], 0
    %16 = vsyncpa [#allocation10], 0
    // Predicated region
    $region2: #{tpu_custom_call.1} parent=1 // pred_check
      _
    $region3: #{tpu_custom_call.1} parent=1 // pred_check_branch
      %18 = sbr.rel (0) target = $region5
    $region4: #{tpu_custom_call.1} parent=1 // pred_region
      %s20 = ssub.s32 16, 16
      %21 = vsyncadd [#allocation3], %s20
      %s23 = sshll.u32 [#allocation2], 4
      %s24 = int_to_ptr.vmem [resolvable:$true] %s23
      %26 = dma.hbm_to_vmem [thread:$0]  %s0, 16, %s24, [#allocation3]
    $region5: #{tpu_custom_call.1} parent=1 // pred_fallthru
      _
    // Predicated region
    $region6: #{tpu_custom_call.1} parent=1 // pred_check
      _
    $region7: #{tpu_custom_call.1} parent=1 // pred_check_branch
      %28 = sbr.rel (0) target = $region9
    $region8: #{tpu_custom_call.1} parent=1 // pred_region
      _
    $region9: #{tpu_custom_call.1} parent=1 // pred_fallthru
      _
    // Predicated region
    $region10: #{tpu_custom_call.1} parent=1 // pred_check
      _
    $region11: #{tpu_custom_call.1} parent=1 // pred_check_branch
      %30 = sbr.rel (0) target = $region13
    $region12: #{tpu_custom_call.1} parent=1 // pred_region
      _
    $region13: #{tpu_custom_call.1} parent=1 // pred_fallthru
      _
    // Predicated region
    $region14: #{tpu_custom_call.1} parent=1 // pred_check
      _
    $region15: #{tpu_custom_call.1} parent=1 // pred_check_branch
      %32 = sbr.rel (0) target = $region17
    $region16: #{tpu_custom_call.1} parent=1 // pred_region
      _
    $region17: #{tpu_custom_call.1} parent=1 // pred_fallthru
      _
    // Predicated region
    $region18: #{tpu_custom_call.1} parent=1 // pred_check
      _
    $region19: #{tpu_custom_call.1} parent=1 // pred_check_branch
      %34 = sbr.rel (0) target = $region21
    $region20: #{tpu_custom_call.1} parent=1 // pred_region
      %35 = dma.done [#allocation3], 16
    $region21: #{tpu_custom_call.1} parent=1 // pred_fallthru
      _
    %v36 = vld [vmem:[#allocation2] sm:$0x1]
    %v37 = vld [vmem:[%s1] sm:$0x1]
    %v38 = vld [vmem:[%s2] sm:$0x1]
    %v39 = vld [vmem:[%s3] sm:$0x1]
    %v40 = vand.u32 2147483647, %v36
    %v41 = vsub.f32 0.0, %v40
    %v42 = vmul.f32 %v41, 1.442695
    %v43 = vpow.pop %v42
    %v44 = vadd.f32 %v43, 1.0
    %v45 = vlog2.pop %v44
    %v46 = vmul.f32 %v45, 0.6931472
    %v47 = vmul.f32 -0.5, %v43
    %v48 = vadd.f32 %v47, 1.0
    %v49 = vmul.f32 %v48, %v43
    %v50 = vand.u32 2147483647, %v43
    %vm51 = vcmp.lt.f32.partialorder %v50, 0.0004427343
    %v52 = vsel %vm51, %v49, %v46
    %v53 = vadd.f32 %v43, 1.0
    %v54 = vrcp.pop %v53
    %v55 = vmul.f32 1.0, %v54
    %vm56 = vcmp.ge.f32.partialorder %v36, 0.0
    %v57 = vmul.f32 %v43, %v55
    %v58 = vsel %vm56, %v55, %v57
    %v59 = vmin.f32 %v58, 0.9999
    %v60 = vsub.f32 1.0, %v59
    %v61 = vmul.f32 %v38, %v59
    %v62 = vmul.f32 %v39, 3.0
    %v63 = vmul.f32 %v62, %v60
    %v64 = vsub.f32 1.0, %v37
    %v65 = vmul.f32 %v61, %v64
    %v66 = vmul.f32 %v63, %v37
    %v67 = vadd.f32 %v65, %v66
    %v68 = vsub.f32 1.0, %v67
    %v69 = vlog2.pop %v68
    %v70 = vmul.f32 %v69, 0.6931472
    %71 = vst [vmem:[#allocation6] sm:$0x1] %v70
    %v72 = vmax.f32 %v36, 0.0
    %v73 = vmul.f32 %v36, %v37
    %v74 = vsub.f32 %v72, %v73
    %v75 = vadd.f32 %v74, %v52
    %76 = vst [vmem:[#allocation5] sm:$0x1] %v75
    %s77 = ssub.s32 1, 0
    %p78 = scmp.lt.s32.totalorder %s77, 1
    %s79 = scalar_select %p78, %s77, 1
    %v80 = vlaneseq
    %v81 = vshrl.u32 %v80, 7
    %v82 = vstv %s79
    %vm83 = vcmp.lt.s32.totalorder %v81, %v82
    %v84 = vsub.f32 1.0, %v61
    %v85 = vlog2.pop %v84
    %v86 = vmul.f32 %v85, 0.6931472
    %v87 = vsel %vm83, %v86, 0.0
    %v88 = vadd.f32 %v87, 0.0
    %89 = vst [vmem:[#allocation8] sm:$0x1] %v88
    %v90 = vmul.f32 %v39, %v60
    %v91 = vsub.f32 1.0, %v90
    %v92 = vlog2.pop %v91
    %v93 = vmul.f32 %v92, 0.6931472
    %v94 = vsel %vm83, %v93, 0.0
    %v95 = vadd.f32 %v94, 0.0
    %96 = vst [vmem:[#allocation9] sm:$0x1] %v95
    // Predicated region
    $region22: #{tpu_custom_call.1} parent=1 // pred_check
      _
    $region23: #{tpu_custom_call.1} parent=1 // pred_check_branch
      %98 = sbr.rel (0) target = $region25
    $region24: #{tpu_custom_call.1} parent=1 // pred_region
      %s100 = ssub.s32 16, 16
      %101 = vsyncadd [#allocation4], %s100
      %s103 = sshll.u32 [#allocation5], 4
      %s104 = int_to_ptr.vmem [resolvable:$true] %s103
      %106 = dma.vmem_to_hbm [thread:$0]  %s104, 16, %s4, [#allocation4]
    $region25: #{tpu_custom_call.1} parent=1 // pred_fallthru
      _
    // Predicated region
    $region26: #{tpu_custom_call.1} parent=1 // pred_check
      _
    $region27: #{tpu_custom_call.1} parent=1 // pred_check_branch
      %108 = sbr.rel (0) target = $region29
    $region28: #{tpu_custom_call.1} parent=1 // pred_region
      %s110 = ssub.s32 16, 16
      %111 = vsyncadd [#allocation7], %s110
      %s113 = sshll.u32 [#allocation6], 4
      %s114 = int_to_ptr.vmem [resolvable:$true] %s113
      %116 = dma.vmem_to_hbm [thread:$0]  %s114, 16, %s5, [#allocation7]
    $region29: #{tpu_custom_call.1} parent=1 // pred_fallthru
      _
    // Predicated region
    $region30: #{tpu_custom_call.1} parent=1 // pred_check
      _
    $region31: #{tpu_custom_call.1} parent=1 // pred_check_branch
      %118 = sbr.rel (0) target = $region33
    $region32: #{tpu_custom_call.1} parent=1 // pred_region
      %s120 = ssub.s32 16, 16
      %121 = vsyncadd [#allocation7], %s120
      %s123 = sshll.u32 [#allocation8], 4
      %s124 = int_to_ptr.vmem [resolvable:$true] %s123
      %126 = dma.vmem_to_hbm [thread:$0]  %s124, 16, %s6, [#allocation7]
    $region33: #{tpu_custom_call.1} parent=1 // pred_fallthru
      _
    // Predicated region
    $region34: #{tpu_custom_call.1} parent=1 // pred_check
      _
    $region35: #{tpu_custom_call.1} parent=1 // pred_check_branch
      %128 = sbr.rel (0) target = $region37
    $region36: #{tpu_custom_call.1} parent=1 // pred_region
      %s130 = ssub.s32 16, 16
      %131 = vsyncadd [#allocation10], %s130
      %s133 = sshll.u32 [#allocation9], 4
      %s134 = int_to_ptr.vmem [resolvable:$true] %s133
      %136 = dma.vmem_to_hbm [thread:$0]  %s134, 16, %s7, [#allocation10]
    $region37: #{tpu_custom_call.1} parent=1 // pred_fallthru
      _
    // Predicated region
    $region38: #{tpu_custom_call.1} parent=1 // pred_check
      _
    $region39: #{tpu_custom_call.1} parent=1 // pred_check_branch
      %138 = sbr.rel (0) target = $region41
    $region40: #{tpu_custom_call.1} parent=1 // pred_region
      %139 = dma.done [#allocation4], 16
    $region41: #{tpu_custom_call.1} parent=1 // pred_fallthru
      _
    // Predicated region
    $region42: #{tpu_custom_call.1} parent=1 // pred_check
      _
    $region43: #{tpu_custom_call.1} parent=1 // pred_check_branch
      %141 = sbr.rel (0) target = $region45
    $region44: #{tpu_custom_call.1} parent=1 // pred_region
      %142 = dma.done [#allocation7], 16
    $region45: #{tpu_custom_call.1} parent=1 // pred_fallthru
      _
    // Predicated region
    $region46: #{tpu_custom_call.1} parent=1 // pred_check
      _
    $region47: #{tpu_custom_call.1} parent=1 // pred_check_branch
      %144 = sbr.rel (0) target = $region49
    $region48: #{tpu_custom_call.1} parent=1 // pred_region
      %145 = dma.done [#allocation7], 16
    $region49: #{tpu_custom_call.1} parent=1 // pred_fallthru
      _
    // Predicated region
    $region50: #{tpu_custom_call.1} parent=1 // pred_check
      _
    $region51: #{tpu_custom_call.1} parent=1 // pred_check_branch
      %147 = sbr.rel (0) target = $region53
    $region52: #{tpu_custom_call.1} parent=1 // pred_region
      %148 = dma.done [#allocation10], 16
    $region53: #{tpu_custom_call.1} parent=1 // pred_fallthru
      _
    %149 = vsyncpa [#allocation3], 1
    %150 = vsyncpa [#allocation4], 1
    %151 = vsyncpa [#allocation7], 1
    %152 = vsyncpa [#allocation10], 1

</llo_original>
